<compile_context>
chip_gen: v6e
topology: v6e:2x2x1
jax: 0.10.0
libtpu: 0.0.40
codegen_flags: <defaults>
</compile_context>

<pallas_src>
import functools

import jax
import jax.numpy as jnp
from jax import lax
from jax.experimental import pallas as pl
from jax.experimental.pallas import tpu as pltpu


def _round_up(x, m):
    return (x + m - 1) // m * m


def _pick_tiles(m, kdim, cout_g):
    """Adaptive, 128-granular tile sizes.

    Caps keep per-step VMEM (double-buffered bf16 inputs + f32 acc + f32
    double-buffered output) around ~3 MiB worst case, well under the default
    scoped-VMEM limit on every TPU generation.
    """
    tm = min(512, _round_up(m, 128))
    tn = min(256, _round_up(cout_g, 128))
    tk = min(512, _round_up(kdim, 128))
    return tm, tn, tk


def _gemm_bn_relu_kernel(p_ref, w_ref, scale_ref, bias_ref, o_ref, *scratch,
                         apply_relu, n_k_steps):
    """Tiled GEMM + fused BN/ReLU epilogue.

    Grid = (groups, M/tm, Cout_g/tn, K/tk); last axis is the reduction.

    p_ref:     (tm, tk)  bf16  im2col patches
    w_ref:     (tk, tn)  bf16  reshaped conv weights
    scale_ref: (1, tn)   f32   folded BN scale
    bias_ref:  (1, tn)   f32   folded BN bias
    o_ref:     (tm, tn)  f32   output tile (lane-dense, tn % 128 == 0)
    scratch:   ()              if n_k_steps == 1
               (acc_ref,)      f32 (tm, tn) accumulator otherwise
    """
    if n_k_steps == 1:
        # Whole reduction fits in one tile: no accumulator, no phase gating.
        acc = jnp.dot(p_ref[...], w_ref[...],
                      preferred_element_type=jnp.float32)
        y = acc * scale_ref[...] + bias_ref[...]
        if apply_relu:
            y = jnp.maximum(y, 0.0)
        o_ref[...] = y.astype(o_ref.dtype)
        return

    acc_ref, = scratch
    kk = pl.program_id(3)

    @pl.when(kk == 0)
    def _():
        acc_ref[...] = jnp.zeros_like(acc_ref)

    acc_ref[...] += jnp.dot(p_ref[...], w_ref[...],
                            preferred_element_type=jnp.float32)

    @pl.when(kk == pl.num_programs(3) - 1)
    def _():
        # Folded BatchNorm (inference) + optional ReLU, fused with the store.
        y = acc_ref[...] * scale_ref[...] + bias_ref[...]
        if apply_relu:
            y = jnp.maximum(y, 0.0)
        o_ref[...] = y.astype(o_ref.dtype)


def conv_module_forward(x_nchw, weight, gamma, beta, running_mean, running_var,
                        *, stride=1, padding=0, groups=1, linear=False,
                        eps=1e-5, compute_dtype=jnp.bfloat16):
    """Conv2d(bias=False) -> BatchNorm2d(eval) -> [ReLU].

    x_nchw: (N, Cin, H, W)                (PyTorch layout)
    weight: (Cout, Cin//groups, KH, KW)   (PyTorch layout)
    Returns (N, Cout, Ho, Wo) float32.
    """
    n, cin, h, w_in = x_nchw.shape
    cout, cin_g, kh, kw = weight.shape
    assert cin_g * groups == cin
    assert cout % groups == 0
    cout_g = cout // groups

    out_h = (h + 2 * padding - kh) // stride + 1
    out_w = (w_in + 2 * padding - kw) // stride + 1

    m = n * out_h * out_w
    kdim = kh * kw * cin_g
    tm, tn, tk = _pick_tiles(m, kdim, cout_g)

    # ---------- plain-JAX glue: layout, im2col, padding, BN folding ----------
    # Cast to the compute dtype early so the im2col intermediate is half-width
    # in HBM (the matmul accumulates in f32 regardless).
    x_nhwc = jnp.transpose(x_nchw, (0, 2, 3, 1)).astype(compute_dtype)
    x_pad = jnp.pad(x_nhwc,
                    ((0, 0), (padding, padding), (padding, padding), (0, 0)))

    # im2col: one tap per (kh, kw), strided window of the padded input.
    taps = []
    for r in range(kh):
        for c in range(kw):
            taps.append(x_pad[:, r: r + (out_h - 1) * stride + 1: stride,
                              c: c + (out_w - 1) * stride + 1: stride, :])
    p = jnp.stack(taps, axis=3)                       # (N, Ho, Wo, KH*KW, Cin)
    p = p.reshape(n, out_h, out_w, kh * kw, groups, cin_g)
    p = jnp.transpose(p, (4, 0, 1, 2, 3, 5))          # (G, N, Ho, Wo, KK, cin_g)
    p = p.reshape(groups, m, kdim)                    # (G, M, K)

    m_pad = _round_up(m, tm)
    k_pad = _round_up(kdim, tk)
    cg_pad = _round_up(cout_g, tn)

    p = jnp.pad(p, ((0, 0), (0, m_pad - m), (0, k_pad - kdim)))

    # Weights: (Cout, cin_g, KH, KW) -> (G, K, cout_g) with K = (r, c, cg).
    w_g = weight.astype(jnp.float32).reshape(groups, cout_g, cin_g, kh, kw)
    w_g = jnp.transpose(w_g, (0, 3, 4, 2, 1))         # (G, KH, KW, cin_g, cout_g)
    w_g = w_g.reshape(groups, kdim, cout_g)
    w_g = jnp.pad(w_g, ((0, 0), (0, k_pad - kdim), (0, cg_pad - cout_g)))
    w_g = w_g.astype(compute_dtype)

    # Folded BatchNorm (inference): y = conv * scale + bias.
    scale = (gamma / jnp.sqrt(running_var + eps)).astype(jnp.float32)
    bias = (beta - running_mean * scale).astype(jnp.float32)
    scale_g = scale.reshape(groups, 1, cout_g)
    bias_g = bias.reshape(groups, 1, cout_g)
    scale_g = jnp.pad(scale_g, ((0, 0), (0, 0), (0, cg_pad - cout_g)))
    bias_g = jnp.pad(bias_g, ((0, 0), (0, 0), (0, cg_pad - cout_g)))

    # ---------- Pallas tiled GEMM with fused BN/ReLU ----------
    n_k_steps = k_pad // tk
    kernel = functools.partial(_gemm_bn_relu_kernel,
                               apply_relu=not linear, n_k_steps=n_k_steps)

    grid = (groups, m_pad // tm, cg_pad // tn, n_k_steps)
    scratch_shapes = ([] if n_k_steps == 1
                      else [pltpu.VMEM((tm, tn), jnp.float32)])

    out_gmc = pl.pallas_call(
        kernel,
        out_shape=jax.ShapeDtypeStruct((groups, m_pad, cg_pad), jnp.float32),
        grid_spec=pltpu.PrefetchScalarGridSpec(
            num_scalar_prefetch=0,
            grid=grid,
            in_specs=[
                pl.BlockSpec((None, tm, tk), lambda g, i, j, kk: (g, i, kk)),
                pl.BlockSpec((None, tk, tn), lambda g, i, j, kk: (g, kk, j)),
                pl.BlockSpec((None, 1, tn), lambda g, i, j, kk: (g, 0, j)),
                pl.BlockSpec((None, 1, tn), lambda g, i, j, kk: (g, 0, j)),
            ],
            out_specs=pl.BlockSpec((None, tm, tn),
                                   lambda g, i, j, kk: (g, i, j)),
            scratch_shapes=scratch_shapes,
        ),
        compiler_params=pltpu.CompilerParams(
            dimension_semantics=("parallel", "parallel", "parallel",
                                 "arbitrary")),
    )(p, w_g, scale_g, bias_g)

    # ---------- plain-JAX glue: unpad + back to NCHW ----------
    y = out_gmc[:, :m, :cout_g]                        # (G, M, cout_g)
    y = y.reshape(groups, n, out_h, out_w, cout_g)
    y = jnp.transpose(y, (1, 0, 4, 2, 3))              # (N, G, cout_g, Ho, Wo)
    return y.reshape(n, cout, out_h, out_w)


def _reference(x_nchw, weight, gamma, beta, running_mean, running_var,
               *, stride, padding, groups, linear, eps=1e-5):
    """Pure-JAX (f32) reference for correctness checking."""
    y = lax.conv_general_dilated(
        x_nchw.astype(jnp.float32), weight.astype(jnp.float32),
        window_strides=(stride, stride),
        padding=[(padding, padding), (padding, padding)],
        feature_group_count=groups,
        dimension_numbers=("NCHW", "OIHW", "NCHW"))
    scale = gamma / jnp.sqrt(running_var + eps)
    bias = beta - running_mean * scale
    y = y * scale[None, :, None, None] + bias[None, :, None, None]
    if not linear:
        y = jnp.maximum(y, 0.0)
    return y


if __name__ == "__main__":
    # ConvModule(in_channels=4, out_channels=8, kernel_size=3,
    #            stride=1, padding=1, groups=1, linear=False)
    N, CIN, H, W = 2, 4, 16, 16
    COUT, K, STRIDE, PAD, GROUPS, LINEAR = 8, 3, 1, 1, 1, False

    key = jax.random.PRNGKey(0)
    k_x, k_w, k_g, k_b, k_m, k_v = jax.random.split(key, 6)

    x = jax.random.normal(k_x, (N, CIN, H, W), jnp.float32)
    weight = jax.random.normal(k_w, (COUT, CIN // GROUPS, K, K),
                               jnp.float32) * 0.1
    gamma = 1.0 + 0.1 * jax.random.normal(k_g, (COUT,), jnp.float32)
    beta = 0.1 * jax.random.normal(k_b, (COUT,), jnp.float32)
    running_mean = 0.1 * jax.random.normal(k_m, (COUT,), jnp.float32)
    running_var = jax.random.uniform(k_v, (COUT,), jnp.float32,
                                     minval=0.5, maxval=1.5)

    out = conv_module_forward(x, weight, gamma, beta, running_mean,
                              running_var, stride=STRIDE, padding=PAD,
                              groups=GROUPS, linear=LINEAR)
    out = jax.block_until_ready(out)

    ref = _reference(x, weight, gamma, beta, running_mean, running_var,
                     stride=STRIDE, padding=PAD, groups=GROUPS, linear=LINEAR)
    assert out.shape == ref.shape == (N, COUT, H, W)
    # bf16 inputs with f32 accumulation vs f32 reference -> loose tolerance.
    assert jnp.allclose(out, ref, atol=5e-2, rtol=5e-2), "mismatch vs reference"

    print("KERNEL_OK")
</pallas_src>

<mosaic_0001>
module attributes {stable_mosaic.version = 11 : i64} {
  func.func @_gemm_bn_relu_kernel(%arg0: i32, %arg1: i32, %arg2: i32, %arg3: i32, %arg4: memref<1x512x128xbf16, #tpu.memory_space<vmem>>, %arg5: memref<1x128x128xbf16, #tpu.memory_space<vmem>>, %arg6: memref<1x1x128xf32, #tpu.memory_space<vmem>>, %arg7: memref<1x1x128xf32, #tpu.memory_space<vmem>>, %arg8: memref<1x512x128xf32, #tpu.memory_space<vmem>>) attributes {dimension_semantics = [#tpu.dimension_semantics<parallel>, #tpu.dimension_semantics<parallel>, #tpu.dimension_semantics<parallel>, #tpu.dimension_semantics<arbitrary>], iteration_bounds = array<i64: 1, 1, 1, 1>, scalar_prefetch = 0 : i64, scratch_operands = 0 : i64, tpu.core_type = #tpu.core_type<tc>, window_params = [{transform_indices = @transform_0, window_bounds = array<i64: 1, 512, 128>}, {transform_indices = @transform_1, window_bounds = array<i64: 1, 128, 128>}, {transform_indices = @transform_2, window_bounds = array<i64: 1, 1, 128>}, {transform_indices = @transform_3, window_bounds = array<i64: 1, 1, 128>}, {transform_indices = @transform_4, window_bounds = array<i64: 1, 512, 128>}]} {
    %c0 = arith.constant 0 : index
    %c0_0 = arith.constant 0 : index
    %c0_1 = arith.constant 0 : index
    %0 = vector.load %arg4[%c0, %c0_0, %c0_1] : memref<1x512x128xbf16, #tpu.memory_space<vmem>>, vector<1x512x128xbf16>
    %1 = vector.shape_cast %0 : vector<1x512x128xbf16> to vector<512x128xbf16>
    %c0_2 = arith.constant 0 : index
    %c0_3 = arith.constant 0 : index
    %c0_4 = arith.constant 0 : index
    %2 = vector.load %arg5[%c0_2, %c0_3, %c0_4] : memref<1x128x128xbf16, #tpu.memory_space<vmem>>, vector<1x128x128xbf16>
    %3 = vector.shape_cast %2 : vector<1x128x128xbf16> to vector<128x128xbf16>
    %cst = arith.constant dense<0.000000e+00> : vector<512x128xf32>
    %4 = tpu.matmul %1, %3, %cst {dimension_numbers = #tpu.dot_dimension_numbers<[1], [0], [0], [1], [0, 0, 1, 1], [], []>} : vector<512x128xbf16>, vector<128x128xbf16>, vector<512x128xf32> -> vector<512x128xf32>
    %c0_5 = arith.constant 0 : index
    %c0_6 = arith.constant 0 : index
    %c0_7 = arith.constant 0 : index
    %5 = vector.load %arg6[%c0_5, %c0_6, %c0_7] : memref<1x1x128xf32, #tpu.memory_space<vmem>>, vector<1x1x128xf32>
    %6 = vector.shape_cast %5 : vector<1x1x128xf32> to vector<1x128xf32>
    %7 = vector.broadcast %6 : vector<1x128xf32> to vector<512x128xf32>
    %8 = arith.mulf %4, %7 : vector<512x128xf32>
    %c0_8 = arith.constant 0 : index
    %c0_9 = arith.constant 0 : index
    %c0_10 = arith.constant 0 : index
    %9 = vector.load %arg7[%c0_8, %c0_9, %c0_10] : memref<1x1x128xf32, #tpu.memory_space<vmem>>, vector<1x1x128xf32>
    %10 = vector.shape_cast %9 : vector<1x1x128xf32> to vector<1x128xf32>
    %11 = vector.broadcast %10 : vector<1x128xf32> to vector<512x128xf32>
    %12 = arith.addf %8, %11 : vector<512x128xf32>
    %cst_11 = arith.constant 0.000000e+00 : f32
    %13 = vector.broadcast %cst_11 : f32 to vector<512x128xf32>
    %14 = arith.maximumf %12, %13 : vector<512x128xf32>
    %c0_12 = arith.constant 0 : index
    %c0_13 = arith.constant 0 : index
    %c0_14 = arith.constant 0 : index
    %15 = vector.load %arg8[%c0_12, %c0_13, %c0_14] : memref<1x512x128xf32, #tpu.memory_space<vmem>>, vector<1x512x128xf32>
    %16 = vector.shape_cast %15 : vector<1x512x128xf32> to vector<512x128xf32>
    %17 = vector.shape_cast %14 : vector<512x128xf32> to vector<1x512x128xf32>
    tpu.vector_store %arg8[%c0_12, %c0_13, %c0_14], %17 {strides = array<i32>} : memref<1x512x128xf32, #tpu.memory_space<vmem>>, vector<1x512x128xf32>,
    return
  }
  func.func @transform_0(%arg0: i32, %arg1: i32, %arg2: i32, %arg3: i32) -> (i32, i32, i32) {
    %c0_i32 = arith.constant 0 : i32
    return %arg0, %arg1, %arg3 : i32, i32, i32
  }
  func.func @transform_1(%arg0: i32, %arg1: i32, %arg2: i32, %arg3: i32) -> (i32, i32, i32) {
    %c0_i32 = arith.constant 0 : i32
    return %arg0, %arg3, %arg2 : i32, i32, i32
  }
  func.func @transform_2(%arg0: i32, %arg1: i32, %arg2: i32, %arg3: i32) -> (i32, i32, i32) {
    %c0_i32 = arith.constant 0 : i32
    %c0_i32_0 = arith.constant 0 : i32
    return %arg0, %c0_i32, %arg2 : i32, i32, i32
  }
  func.func @transform_3(%arg0: i32, %arg1: i32, %arg2: i32, %arg3: i32) -> (i32, i32, i32) {
    %c0_i32 = arith.constant 0 : i32
    %c0_i32_0 = arith.constant 0 : i32
    return %arg0, %c0_i32, %arg2 : i32, i32, i32
  }
  func.func @transform_4(%arg0: i32, %arg1: i32, %arg2: i32, %arg3: i32) -> (i32, i32, i32) {
    %c0_i32 = arith.constant 0 : i32
    return %arg0, %arg1, %arg2 : i32, i32, i32
  }
}

</mosaic_0001>

<llo_original>
// kernel: tpu_custom_call.1
$region0: #{tpu_custom_call.1}
  #allocation0 [shape = 'u32[]', space=smem, size = 0x4, offset = 0x4, fixed_abs, tag = 'smem constant byte address 0x4 - core index']
  #allocation1 [shape = 'u32[144,128]{1,0:T(1,128)}', space=vmem, size = 0x12000, scoped, tag = 'internal scratch']
  %s0 = inlined_call_operand.hbm [shape: bf16[1,512,128], index: 0, kind: input, shape index: {}]
  %s1 = inlined_call_operand.hbm [shape: bf16[1,128,128], index: 1, kind: input, shape index: {}]
  %s2 = inlined_call_operand.vmem [shape: f32[1,1,128], index: 2, kind: input, shape index: {}]
  %s3 = inlined_call_operand.vmem [shape: f32[1,1,128], index: 3, kind: input, shape index: {}]
  %s4 = inlined_call_operand.hbm [shape: f32[1,512,128], index: 4, kind: output, shape index: {}]
  %s5 = sld [smem:[#allocation0]]
  $region34: #{tpu_custom_call.1} parent=0
    _
  %s7 = ssub.s32 1, %s5
  %s8 = scalar_select 0, %s7, %s5
  $region1: #{tpu_custom_call.1} parent=0
    #allocation2 [shape = 'u8[131072]{0}', space=vmem, size = 0x20000, scoped, tag = 'input window, operand 0, single buffered']
    #allocation3 [shape = 's32[1]{0}', space=sflag, size = 0x4, scoped, tag = 'scoped memory for tpu_custom_call.1']
    #allocation4 [shape = 's32[1]{0}', space=sflag, size = 0x4, scoped, tag = 'scoped memory for tpu_custom_call.1']
    #allocation5 [shape = 'u8[32768]{0}', space=vmem, size = 0x8000, scoped, tag = 'input window, operand 1, single buffered']
    #allocation6 [shape = 's32[1]{0}', space=sflag, size = 0x4, scoped, tag = 'scoped memory for tpu_custom_call.1']
    #allocation7 [shape = 'u8[262144]{0}', space=vmem, size = 0x40000, scoped, tag = 'output window, operand 0, single buffered']
    %9 = vsyncpa [#allocation3], 0
    %10 = vsyncpa [#allocation6], 0
    %11 = vsyncpa [#allocation4], 0
    // Predicated region
    $region2: #{tpu_custom_call.1} parent=1 // pred_check
      _
    $region3: #{tpu_custom_call.1} parent=1 // pred_check_branch
      %13 = sbr.rel (0) target = $region5
    $region4: #{tpu_custom_call.1} parent=1 // pred_region
      %s15 = ssub.s32 4096, 4096
      %16 = vsyncadd [#allocation3], %s15
      %s17 = sshll.u32 [#allocation2], 4
      %s18 = int_to_ptr.vmem [resolvable:$true] %s17
      %23 = dma.hbm_to_vmem [thread:$0]  %s0, 4096, %s18, [#allocation3], 64, 64, 4
    $region5: #{tpu_custom_call.1} parent=1 // pred_fallthru
      _
    // Predicated region
    $region6: #{tpu_custom_call.1} parent=1 // pred_check
      _
    $region7: #{tpu_custom_call.1} parent=1 // pred_check_branch
      %25 = sbr.rel (0) target = $region9
    $region8: #{tpu_custom_call.1} parent=1 // pred_region
      %s27 = ssub.s32 1024, 1024
      %28 = vsyncadd [#allocation6], %s27
      %s29 = sshll.u32 [#allocation5], 4
      %s30 = int_to_ptr.vmem [resolvable:$true] %s29
      %35 = dma.hbm_to_vmem [thread:$0]  %s1, 1024, %s30, [#allocation6], 64, 64, 4
    $region9: #{tpu_custom_call.1} parent=1 // pred_fallthru
      _
    // Predicated region
    $region10: #{tpu_custom_call.1} parent=1 // pred_check
      _
    $region11: #{tpu_custom_call.1} parent=1 // pred_check_branch
      %37 = sbr.rel (0) target = $region13
    $region12: #{tpu_custom_call.1} parent=1 // pred_region
      _
    $region13: #{tpu_custom_call.1} parent=1 // pred_fallthru
      _
    // Predicated region
    $region14: #{tpu_custom_call.1} parent=1 // pred_check
      _
    $region15: #{tpu_custom_call.1} parent=1 // pred_check_branch
      %39 = sbr.rel (0) target = $region17
    $region16: #{tpu_custom_call.1} parent=1 // pred_region
      _
    $region17: #{tpu_custom_call.1} parent=1 // pred_fallthru
      _
    // Predicated region
    $region18: #{tpu_custom_call.1} parent=1 // pred_check
      _
    $region19: #{tpu_custom_call.1} parent=1 // pred_check_branch
      %41 = sbr.rel (0) target = $region21
    $region20: #{tpu_custom_call.1} parent=1 // pred_region
      %42 = dma.done [#allocation3], 4096
    $region21: #{tpu_custom_call.1} parent=1 // pred_fallthru
      _
    // Predicated region
    $region22: #{tpu_custom_call.1} parent=1 // pred_check
      _
    $region23: #{tpu_custom_call.1} parent=1 // pred_check_branch
      %44 = sbr.rel (0) target = $region25
    $region24: #{tpu_custom_call.1} parent=1 // pred_region
      %45 = dma.done [#allocation6], 1024
    $region25: #{tpu_custom_call.1} parent=1 // pred_fallthru
      _
    %v47 = vld [vmem:[#allocation2] sm:$0xf]
    %v48 = vld [vmem:[#allocation2 + $0x4] sm:$0xf]
    %v49 = vld [vmem:[#allocation2 + $0x8] sm:$0xf]
    %v50 = vld [vmem:[#allocation2 + $0xc] sm:$0xf]
    %v51 = vld [vmem:[#allocation2 + $0x10] sm:$0xf]
    %v52 = vld [vmem:[#allocation2 + $0x14] sm:$0xf]
    %v53 = vld [vmem:[#allocation2 + $0x18] sm:$0xf]
    %v54 = vld [vmem:[#allocation2 + $0x1c] sm:$0xf]
    %v55 = vld [vmem:[#allocation2 + $0x20] sm:$0xf]
    %v56 = vld [vmem:[#allocation2 + $0x24] sm:$0xf]
    %v57 = vld [vmem:[#allocation2 + $0x28] sm:$0xf]
    %v58 = vld [vmem:[#allocation2 + $0x2c] sm:$0xf]
    %v59 = vld [vmem:[#allocation2 + $0x30] sm:$0xf]
    %v60 = vld [vmem:[#allocation2 + $0x34] sm:$0xf]
    %v61 = vld [vmem:[#allocation2 + $0x38] sm:$0xf]
    %v62 = vld [vmem:[#allocation2 + $0x3c] sm:$0xf]
    %v63 = vld [vmem:[#allocation2 + $0x40] sm:$0xf]
    %v64 = vld [vmem:[#allocation2 + $0x44] sm:$0xf]
    %v65 = vld [vmem:[#allocation2 + $0x48] sm:$0xf]
    %v66 = vld [vmem:[#allocation2 + $0x4c] sm:$0xf]
    %v67 = vld [vmem:[#allocation2 + $0x50] sm:$0xf]
    %v68 = vld [vmem:[#allocation2 + $0x54] sm:$0xf]
    %v69 = vld [vmem:[#allocation2 + $0x58] sm:$0xf]
    %v70 = vld [vmem:[#allocation2 + $0x5c] sm:$0xf]
    %v71 = vld [vmem:[#allocation2 + $0x60] sm:$0xf]
    %v72 = vld [vmem:[#allocation2 + $0x64] sm:$0xf]
    %v73 = vld [vmem:[#allocation2 + $0x68] sm:$0xf]
    %v74 = vld [vmem:[#allocation2 + $0x6c] sm:$0xf]
    %v75 = vld [vmem:[#allocation2 + $0x70] sm:$0xf]
    %v76 = vld [vmem:[#allocation2 + $0x74] sm:$0xf]
    %v77 = vld [vmem:[#allocation2 + $0x78] sm:$0xf]
    %v78 = vld [vmem:[#allocation2 + $0x7c] sm:$0xf]
    %v79 = vld [vmem:[#allocation2 + $0x80] sm:$0xf]
    %v80 = vld [vmem:[#allocation2 + $0x84] sm:$0xf]
    %v81 = vld [vmem:[#allocation2 + $0x88] sm:$0xf]
    %v82 = vld [vmem:[#allocation2 + $0x8c] sm:$0xf]
    %v83 = vld [vmem:[#allocation2 + $0x90] sm:$0xf]
    %v84 = vld [vmem:[#allocation2 + $0x94] sm:$0xf]
    %v85 = vld [vmem:[#allocation2 + $0x98] sm:$0xf]
    %v86 = vld [vmem:[#allocation2 + $0x9c] sm:$0xf]
    %v87 = vld [vmem:[#allocation2 + $0xa0] sm:$0xf]
    %v88 = vld [vmem:[#allocation2 + $0xa4] sm:$0xf]
    %v89 = vld [vmem:[#allocation2 + $0xa8] sm:$0xf]
    %v90 = vld [vmem:[#allocation2 + $0xac] sm:$0xf]
    %v91 = vld [vmem:[#allocation2 + $0xb0] sm:$0xf]
    %v92 = vld [vmem:[#allocation2 + $0xb4] sm:$0xf]
    %v93 = vld [vmem:[#allocation2 + $0xb8] sm:$0xf]
    %v94 = vld [vmem:[#allocation2 + $0xbc] sm:$0xf]
    %v95 = vld [vmem:[#allocation2 + $0xc0] sm:$0xf]
    %v96 = vld [vmem:[#allocation2 + $0xc4] sm:$0xf]
    %v97 = vld [vmem:[#allocation2 + $0xc8] sm:$0xf]
    %v98 = vld [vmem:[#allocation2 + $0xcc] sm:$0xf]
    %v99 = vld [vmem:[#allocation2 + $0xd0] sm:$0xf]
    %v100 = vld [vmem:[#allocation2 + $0xd4] sm:$0xf]
    %v101 = vld [vmem:[#allocation2 + $0xd8] sm:$0xf]
    %v102 = vld [vmem:[#allocation2 + $0xdc] sm:$0xf]
    %v103 = vld [vmem:[#allocation2 + $0xe0] sm:$0xf]
    %v104 = vld [vmem:[#allocation2 + $0xe4] sm:$0xf]
    %v105 = vld [vmem:[#allocation2 + $0xe8] sm:$0xf]
    %v106 = vld [vmem:[#allocation2 + $0xec] sm:$0xf]
    %v107 = vld [vmem:[#allocation2 + $0xf0] sm:$0xf]
    %v108 = vld [vmem:[#allocation2 + $0xf4] sm:$0xf]
    %v109 = vld [vmem:[#allocation2 + $0xf8] sm:$0xf]
    %v110 = vld [vmem:[#allocation2 + $0xfc] sm:$0xf]
    %v111 = vld [vmem:[#allocation5] sm:$0xf]
    %v112 = vld [vmem:[#allocation5 + $0x4] sm:$0xf]
    %v113 = vld [vmem:[#allocation5 + $0x8] sm:$0xf]
    %v114 = vld [vmem:[#allocation5 + $0xc] sm:$0xf]
    %v115 = vld [vmem:[#allocation5 + $0x10] sm:$0xf]
    %v116 = vld [vmem:[#allocation5 + $0x14] sm:$0xf]
    %v117 = vld [vmem:[#allocation5 + $0x18] sm:$0xf]
    %v118 = vld [vmem:[#allocation5 + $0x1c] sm:$0xf]
    %v119 = vld [vmem:[#allocation5 + $0x20] sm:$0xf]
    %v120 = vld [vmem:[#allocation5 + $0x24] sm:$0xf]
    %v121 = vld [vmem:[#allocation5 + $0x28] sm:$0xf]
    %v122 = vld [vmem:[#allocation5 + $0x2c] sm:$0xf]
    %v123 = vld [vmem:[#allocation5 + $0x30] sm:$0xf]
    %v124 = vld [vmem:[#allocation5 + $0x34] sm:$0xf]
    %v125 = vld [vmem:[#allocation5 + $0x38] sm:$0xf]
    %v126 = vld [vmem:[#allocation5 + $0x3c] sm:$0xf]
    %v191 = vunpack.c.l.b16 %v47
    %v192 = vunpack.c.l.b16 %v48
    %v193 = vunpack.c.l.b16 %v49
    %v194 = vunpack.c.l.b16 %v50
    %v195 = vunpack.c.l.b16 %v51
    %v196 = vunpack.c.l.b16 %v52
    %v197 = vunpack.c.l.b16 %v53
    %v198 = vunpack.c.l.b16 %v54
    %v199 = vunpack.c.l.b16 %v55
    %v200 = vunpack.c.l.b16 %v56
    %v201 = vunpack.c.l.b16 %v57
    %v202 = vunpack.c.l.b16 %v58
    %v203 = vunpack.c.l.b16 %v59
    %v204 = vunpack.c.l.b16 %v60
    %v205 = vunpack.c.l.b16 %v61
    %v206 = vunpack.c.l.b16 %v62
    %v207 = vunpack.c.l.b16 %v63
    %v208 = vunpack.c.l.b16 %v64
    %v209 = vunpack.c.l.b16 %v65
    %v210 = vunpack.c.l.b16 %v66
    %v211 = vunpack.c.l.b16 %v67
    %v212 = vunpack.c.l.b16 %v68
    %v213 = vunpack.c.l.b16 %v69
    %v214 = vunpack.c.l.b16 %v70
    %v215 = vunpack.c.l.b16 %v71
    %v216 = vunpack.c.l.b16 %v72
    %v217 = vunpack.c.l.b16 %v73
    %v218 = vunpack.c.l.b16 %v74
    %v219 = vunpack.c.l.b16 %v75
    %v220 = vunpack.c.l.b16 %v76
    %v221 = vunpack.c.l.b16 %v77
    %v222 = vunpack.c.l.b16 %v78
    %v223 = vunpack.c.l.b16 %v79
    %v224 = vunpack.c.l.b16 %v80
    %v225 = vunpack.c.l.b16 %v81
    %v226 = vunpack.c.l.b16 %v82
    %v227 = vunpack.c.l.b16 %v83
    %v228 = vunpack.c.l.b16 %v84
    %v229 = vunpack.c.l.b16 %v85
    %v230 = vunpack.c.l.b16 %v86
    %v231 = vunpack.c.l.b16 %v87
    %v232 = vunpack.c.l.b16 %v88
    %v233 = vunpack.c.l.b16 %v89
    %v234 = vunpack.c.l.b16 %v90
    %v235 = vunpack.c.l.b16 %v91
    %v236 = vunpack.c.l.b16 %v92
    %v237 = vunpack.c.l.b16 %v93
    %v238 = vunpack.c.l.b16 %v94
    %v239 = vunpack.c.l.b16 %v95
    %v240 = vunpack.c.l.b16 %v96
    %v241 = vunpack.c.l.b16 %v97
    %v242 = vunpack.c.l.b16 %v98
    %v243 = vunpack.c.l.b16 %v99
    %v244 = vunpack.c.l.b16 %v100
    %v245 = vunpack.c.l.b16 %v101
    %v246 = vunpack.c.l.b16 %v102
    %v247 = vunpack.c.l.b16 %v103
    %v248 = vunpack.c.l.b16 %v104
    %v249 = vunpack.c.l.b16 %v105
    %v250 = vunpack.c.l.b16 %v106
    %v251 = vunpack.c.l.b16 %v107
    %v252 = vunpack.c.l.b16 %v108
    %v253 = vunpack.c.l.b16 %v109
    %v254 = vunpack.c.l.b16 %v110
    %v255 = vpack.c.b16 %v192, %v191
    %v256 = vpack.c.b16 %v194, %v193
    %v257 = vpack.c.b16 %v196, %v195
    %v258 = vpack.c.b16 %v198, %v197
    %v259 = vpack.c.b16 %v200, %v199
    %v260 = vpack.c.b16 %v202, %v201
    %v261 = vpack.c.b16 %v204, %v203
    %v262 = vpack.c.b16 %v206, %v205
    %v263 = vpack.c.b16 %v208, %v207
    %v264 = vpack.c.b16 %v210, %v209
    %v265 = vpack.c.b16 %v212, %v211
    %v266 = vpack.c.b16 %v214, %v213
    %v267 = vpack.c.b16 %v216, %v215
    %v268 = vpack.c.b16 %v218, %v217
    %v269 = vpack.c.b16 %v220, %v219
    %v270 = vpack.c.b16 %v222, %v221
    %v271 = vpack.c.b16 %v224, %v223
    %v272 = vpack.c.b16 %v226, %v225
    %v273 = vpack.c.b16 %v228, %v227
    %v274 = vpack.c.b16 %v230, %v229
    %v275 = vpack.c.b16 %v232, %v231
    %v276 = vpack.c.b16 %v234, %v233
    %v277 = vpack.c.b16 %v236, %v235
    %v278 = vpack.c.b16 %v238, %v237
    %v279 = vpack.c.b16 %v240, %v239
    %v280 = vpack.c.b16 %v242, %v241
    %v281 = vpack.c.b16 %v244, %v243
    %v282 = vpack.c.b16 %v246, %v245
    %v283 = vpack.c.b16 %v248, %v247
    %v284 = vpack.c.b16 %v250, %v249
    %v285 = vpack.c.b16 %v252, %v251
    %v286 = vpack.c.b16 %v254, %v253
    %v335 = vunpack.c.l.b16 %v111
    %v336 = vunpack.c.l.b16 %v112
    %v337 = vunpack.c.l.b16 %v113
    %v338 = vunpack.c.l.b16 %v114
    %v339 = vunpack.c.l.b16 %v115
    %v340 = vunpack.c.l.b16 %v116
    %v341 = vunpack.c.l.b16 %v117
    %v342 = vunpack.c.l.b16 %v118
    %v343 = vunpack.c.l.b16 %v119
    %v344 = vunpack.c.l.b16 %v120
    %v345 = vunpack.c.l.b16 %v121
    %v346 = vunpack.c.l.b16 %v122
    %v347 = vunpack.c.l.b16 %v123
    %v348 = vunpack.c.l.b16 %v124
    %v349 = vunpack.c.l.b16 %v125
    %v350 = vunpack.c.l.b16 %v126
    %v351 = vpack.c.b16 %v336, %v335
    %v352 = vpack.c.b16 %v338, %v337
    %v353 = vpack.c.b16 %v340, %v339
    %v354 = vpack.c.b16 %v342, %v341
    %v355 = vpack.c.b16 %v344, %v343
    %v356 = vpack.c.b16 %v346, %v345
    %v357 = vpack.c.b16 %v348, %v347
    %v358 = vpack.c.b16 %v350, %v349
    %367 = vmatprep.subr.bf16.mxu0 0
    %368 = vmatpush1.bf16.msra.mxu0 %v358
    %369 = vmatprep.subr.bf16.mxu0 0
    %370 = vmatpush1.bf16.msra.mxu0 %v357
    %371 = vmatprep.subr.bf16.mxu0 0
    %372 = vmatpush1.bf16.msra.mxu0 %v356
    %373 = vmatprep.subr.bf16.mxu0 0
    %374 = vmatpush1.bf16.msra.mxu0 %v355
    %375 = vmatprep.subr.bf16.mxu0 0
    %376 = vmatpush1.bf16.msra.mxu0 %v354
    %377 = vmatprep.subr.bf16.mxu0 0
    %378 = vmatpush1.bf16.msra.mxu0 %v353
    %379 = vmatprep.subr.bf16.mxu0 0
    %380 = vmatpush1.bf16.msra.mxu0 %v352
    %381 = vmatprep.subr.bf16.mxu0 0
    %382 = vmatpush1.bf16.msra.mxu0 %v351
    %383 = vmatprep.subr.bf16.mxu0 0
    %384 = vmatpush2.bf16.msra.mxu0 0
    %385 = vmatprep.subr.bf16.mxu0 0
    %386 = vmatpush2.bf16.msra.mxu0 0
    %387 = vmatprep.subr.bf16.mxu0 0
    %388 = vmatpush2.bf16.msra.mxu0 0
    %389 = vmatprep.subr.bf16.mxu0 0
    %390 = vmatpush2.bf16.msra.mxu0 0
    %391 = vmatprep.subr.bf16.mxu0 0
    %392 = vmatpush2.bf16.msra.mxu0 0
    %393 = vmatprep.subr.bf16.mxu0 0
    %394 = vmatpush2.bf16.msra.mxu0 0
    %395 = vmatprep.subr.bf16.mxu0 0
    %396 = vmatpush2.bf16.msra.mxu0 0
    %397 = vmatprep.subr.bf16.mxu0 0
    %398 = vmatpush2.bf16.msra.mxu0 0
    %399 = vmatprep.mubr.bf16.mxu0 0
    %400 = vmatmul.mubr.bf16.gmra.mxu0 %v255
    %v401 = vpop.f32.mrf.mxu0
    %v402 = vadd.f32 0.0, %v401
    %v403 = vpop.f32.mrf.mxu0
    %v404 = vpop.f32.mrf.mxu0
    %v405 = vadd.f32 0.0, %v404
    %v406 = vpop.f32.mrf.mxu0
    %407 = vmatprep.mubr.bf16.mxu0 0
    %408 = vmatmul.mubr.bf16.gmra.mxu0 %v256
    %v409 = vpop.f32.mrf.mxu0
    %v410 = vadd.f32 0.0, %v409
    %v411 = vpop.f32.mrf.mxu0
    %v412 = vpop.f32.mrf.mxu0
    %v413 = vadd.f32 0.0, %v412
    %v414 = vpop.f32.mrf.mxu0
    %415 = vmatprep.mubr.bf16.mxu0 0
    %416 = vmatmul.mubr.bf16.gmra.mxu0 %v257
    %v417 = vpop.f32.mrf.mxu0
    %v418 = vadd.f32 0.0, %v417
    %v419 = vpop.f32.mrf.mxu0
    %v420 = vpop.f32.mrf.mxu0
    %v421 = vadd.f32 0.0, %v420
    %v422 = vpop.f32.mrf.mxu0
    %423 = vmatprep.mubr.bf16.mxu0 0
    %424 = vmatmul.mubr.bf16.gmra.mxu0 %v258
    %v425 = vpop.f32.mrf.mxu0
    %v426 = vadd.f32 0.0, %v425
    %v427 = vpop.f32.mrf.mxu0
    %v428 = vpop.f32.mrf.mxu0
    %v429 = vadd.f32 0.0, %v428
    %v430 = vpop.f32.mrf.mxu0
    %431 = vmatprep.mubr.bf16.mxu0 0
    %432 = vmatmul.mubr.bf16.gmra.mxu0 %v259
    %v433 = vpop.f32.mrf.mxu0
    %v434 = vadd.f32 0.0, %v433
    %v435 = vpop.f32.mrf.mxu0
    %v436 = vpop.f32.mrf.mxu0
    %v437 = vadd.f32 0.0, %v436
    %v438 = vpop.f32.mrf.mxu0
    %439 = vmatprep.mubr.bf16.mxu0 0
    %440 = vmatmul.mubr.bf16.gmra.mxu0 %v260
    %v441 = vpop.f32.mrf.mxu0
    %v442 = vadd.f32 0.0, %v441
    %v443 = vpop.f32.mrf.mxu0
    %v444 = vpop.f32.mrf.mxu0
    %v445 = vadd.f32 0.0, %v444
    %v446 = vpop.f32.mrf.mxu0
    %447 = vmatprep.mubr.bf16.mxu0 0
    %448 = vmatmul.mubr.bf16.gmra.mxu0 %v261
    %v449 = vpop.f32.mrf.mxu0
    %v450 = vadd.f32 0.0, %v449
    %v451 = vpop.f32.mrf.mxu0
    %v452 = vpop.f32.mrf.mxu0
    %v453 = vadd.f32 0.0, %v452
    %v454 = vpop.f32.mrf.mxu0
    %455 = vmatprep.mubr.bf16.mxu0 0
    %456 = vmatmul.mubr.bf16.gmra.mxu0 %v262
    %v457 = vpop.f32.mrf.mxu0
    %v458 = vadd.f32 0.0, %v457
    %v459 = vpop.f32.mrf.mxu0
    %v460 = vpop.f32.mrf.mxu0
    %v461 = vadd.f32 0.0, %v460
    %v462 = vpop.f32.mrf.mxu0
    %463 = vmatprep.mubr.bf16.mxu0 0
    %464 = vmatmul.mubr.bf16.gmra.mxu0 %v263
    %v465 = vpop.f32.mrf.mxu0
    %v466 = vadd.f32 0.0, %v465
    %v467 = vpop.f32.mrf.mxu0
    %v468 = vpop.f32.mrf.mxu0
    %v469 = vadd.f32 0.0, %v468
    %v470 = vpop.f32.mrf.mxu0
    %471 = vmatprep.mubr.bf16.mxu0 0
    %472 = vmatmul.mubr.bf16.gmra.mxu0 %v264
    %v473 = vpop.f32.mrf.mxu0
    %v474 = vadd.f32 0.0, %v473
    %v475 = vpop.f32.mrf.mxu0
    %v476 = vpop.f32.mrf.mxu0
    %v477 = vadd.f32 0.0, %v476
    %v478 = vpop.f32.mrf.mxu0
    %479 = vmatprep.mubr.bf16.mxu0 0
    %480 = vmatmul.mubr.bf16.gmra.mxu0 %v265
    %v481 = vpop.f32.mrf.mxu0
    %v482 = vadd.f32 0.0, %v481
    %v483 = vpop.f32.mrf.mxu0
    %v484 = vpop.f32.mrf.mxu0
    %v485 = vadd.f32 0.0, %v484
    %v486 = vpop.f32.mrf.mxu0
    %487 = vmatprep.mubr.bf16.mxu0 0
    %488 = vmatmul.mubr.bf16.gmra.mxu0 %v266
    %v489 = vpop.f32.mrf.mxu0
    %v490 = vadd.f32 0.0, %v489
    %v491 = vpop.f32.mrf.mxu0
    %v492 = vpop.f32.mrf.mxu0
    %v493 = vadd.f32 0.0, %v492
    %v494 = vpop.f32.mrf.mxu0
    %495 = vmatprep.mubr.bf16.mxu0 0
    %496 = vmatmul.mubr.bf16.gmra.mxu0 %v267
    %v497 = vpop.f32.mrf.mxu0
    %v498 = vadd.f32 0.0, %v497
    %v499 = vpop.f32.mrf.mxu0
    %v500 = vpop.f32.mrf.mxu0
    %v501 = vadd.f32 0.0, %v500
    %v502 = vpop.f32.mrf.mxu0
    %503 = vmatprep.mubr.bf16.mxu0 0
    %504 = vmatmul.mubr.bf16.gmra.mxu0 %v268
    %v505 = vpop.f32.mrf.mxu0
    %v506 = vadd.f32 0.0, %v505
    %v507 = vpop.f32.mrf.mxu0
    %v508 = vpop.f32.mrf.mxu0
    %v509 = vadd.f32 0.0, %v508
    %v510 = vpop.f32.mrf.mxu0
    %511 = vmatprep.mubr.bf16.mxu0 0
    %512 = vmatmul.mubr.bf16.gmra.mxu0 %v269
    %v513 = vpop.f32.mrf.mxu0
    %v514 = vadd.f32 0.0, %v513
    %v515 = vpop.f32.mrf.mxu0
    %v516 = vpop.f32.mrf.mxu0
    %v517 = vadd.f32 0.0, %v516
    %v518 = vpop.f32.mrf.mxu0
    %519 = vmatprep.mubr.bf16.mxu0 0
    %520 = vmatmul.mubr.bf16.gmra.mxu0 %v270
    %v521 = vpop.f32.mrf.mxu0
    %v522 = vadd.f32 0.0, %v521
    %v523 = vpop.f32.mrf.mxu0
    %v524 = vpop.f32.mrf.mxu0
    %v525 = vadd.f32 0.0, %v524
    %v526 = vpop.f32.mrf.mxu0
    %527 = vmatprep.mubr.bf16.mxu0 0
    %528 = vmatmul.mubr.bf16.gmra.mxu0 %v271
    %v529 = vpop.f32.mrf.mxu0
    %v530 = vadd.f32 0.0, %v529
    %v531 = vpop.f32.mrf.mxu0
    %v532 = vpop.f32.mrf.mxu0
    %v533 = vadd.f32 0.0, %v532
    %v534 = vpop.f32.mrf.mxu0
    %535 = vmatprep.mubr.bf16.mxu0 0
    %536 = vmatmul.mubr.bf16.gmra.mxu0 %v272
    %v537 = vpop.f32.mrf.mxu0
    %v538 = vadd.f32 0.0, %v537
    %v539 = vpop.f32.mrf.mxu0
    %v540 = vpop.f32.mrf.mxu0
    %v541 = vadd.f32 0.0, %v540
    %v542 = vpop.f32.mrf.mxu0
    %543 = vmatprep.mubr.bf16.mxu0 0
    %544 = vmatmul.mubr.bf16.gmra.mxu0 %v273
    %v545 = vpop.f32.mrf.mxu0
    %v546 = vadd.f32 0.0, %v545
    %v547 = vpop.f32.mrf.mxu0
    %v548 = vpop.f32.mrf.mxu0
    %v549 = vadd.f32 0.0, %v548
    %v550 = vpop.f32.mrf.mxu0
    %551 = vmatprep.mubr.bf16.mxu0 0
    %552 = vmatmul.mubr.bf16.gmra.mxu0 %v274
    %v553 = vpop.f32.mrf.mxu0
    %v554 = vadd.f32 0.0, %v553
    %v555 = vpop.f32.mrf.mxu0
    %v556 = vpop.f32.mrf.mxu0
    %v557 = vadd.f32 0.0, %v556
    %v558 = vpop.f32.mrf.mxu0
    %559 = vmatprep.mubr.bf16.mxu0 0
    %560 = vmatmul.mubr.bf16.gmra.mxu0 %v275
    %v561 = vpop.f32.mrf.mxu0
    %v562 = vadd.f32 0.0, %v561
    %v563 = vpop.f32.mrf.mxu0
    %v564 = vpop.f32.mrf.mxu0
    %v565 = vadd.f32 0.0, %v564
    %v566 = vpop.f32.mrf.mxu0
    %567 = vmatprep.mubr.bf16.mxu0 0
    %568 = vmatmul.mubr.bf16.gmra.mxu0 %v276
    %v569 = vpop.f32.mrf.mxu0
    %v570 = vadd.f32 0.0, %v569
    %v571 = vpop.f32.mrf.mxu0
    %v572 = vpop.f32.mrf.mxu0
    %v573 = vadd.f32 0.0, %v572
    %v574 = vpop.f32.mrf.mxu0
    %575 = vmatprep.mubr.bf16.mxu0 0
    %576 = vmatmul.mubr.bf16.gmra.mxu0 %v277
    %v577 = vpop.f32.mrf.mxu0
    %v578 = vadd.f32 0.0, %v577
    %v579 = vpop.f32.mrf.mxu0
    %v580 = vpop.f32.mrf.mxu0
    %v581 = vadd.f32 0.0, %v580
    %v582 = vpop.f32.mrf.mxu0
    %583 = vmatprep.mubr.bf16.mxu0 0
    %584 = vmatmul.mubr.bf16.gmra.mxu0 %v278
    %v585 = vpop.f32.mrf.mxu0
    %v586 = vadd.f32 0.0, %v585
    %v587 = vpop.f32.mrf.mxu0
    %v588 = vpop.f32.mrf.mxu0
    %v589 = vadd.f32 0.0, %v588
    %v590 = vpop.f32.mrf.mxu0
    %591 = vmatprep.mubr.bf16.mxu0 0
    %592 = vmatmul.mubr.bf16.gmra.mxu0 %v279
    %v593 = vpop.f32.mrf.mxu0
    %v594 = vadd.f32 0.0, %v593
    %v595 = vpop.f32.mrf.mxu0
    %v596 = vpop.f32.mrf.mxu0
    %v597 = vadd.f32 0.0, %v596
    %v598 = vpop.f32.mrf.mxu0
    %599 = vmatprep.mubr.bf16.mxu0 0
    %600 = vmatmul.mubr.bf16.gmra.mxu0 %v280
    %v601 = vpop.f32.mrf.mxu0
    %v602 = vadd.f32 0.0, %v601
    %v603 = vpop.f32.mrf.mxu0
    %v604 = vpop.f32.mrf.mxu0
    %v605 = vadd.f32 0.0, %v604
    %v606 = vpop.f32.mrf.mxu0
    %607 = vmatprep.mubr.bf16.mxu0 0
    %608 = vmatmul.mubr.bf16.gmra.mxu0 %v281
    %v609 = vpop.f32.mrf.mxu0
    %v610 = vadd.f32 0.0, %v609
    %v611 = vpop.f32.mrf.mxu0
    %v612 = vpop.f32.mrf.mxu0
    %v613 = vadd.f32 0.0, %v612
    %v614 = vpop.f32.mrf.mxu0
    %615 = vmatprep.mubr.bf16.mxu0 0
    %616 = vmatmul.mubr.bf16.gmra.mxu0 %v282
    %v617 = vpop.f32.mrf.mxu0
    %v618 = vadd.f32 0.0, %v617
    %v619 = vpop.f32.mrf.mxu0
    %v620 = vpop.f32.mrf.mxu0
    %v621 = vadd.f32 0.0, %v620
    %v622 = vpop.f32.mrf.mxu0
    %623 = vmatprep.mubr.bf16.mxu0 0
    %624 = vmatmul.mubr.bf16.gmra.mxu0 %v283
    %v625 = vpop.f32.mrf.mxu0
    %v626 = vadd.f32 0.0, %v625
    %v627 = vpop.f32.mrf.mxu0
    %v628 = vpop.f32.mrf.mxu0
    %v629 = vadd.f32 0.0, %v628
    %v630 = vpop.f32.mrf.mxu0
    %631 = vmatprep.mubr.bf16.mxu0 0
    %632 = vmatmul.mubr.bf16.gmra.mxu0 %v284
    %v633 = vpop.f32.mrf.mxu0
    %v634 = vadd.f32 0.0, %v633
    %v635 = vpop.f32.mrf.mxu0
    %v636 = vpop.f32.mrf.mxu0
    %v637 = vadd.f32 0.0, %v636
    %v638 = vpop.f32.mrf.mxu0
    %639 = vmatprep.mubr.bf16.mxu0 0
    %640 = vmatmul.mubr.bf16.gmra.mxu0 %v285
    %v641 = vpop.f32.mrf.mxu0
    %v642 = vadd.f32 0.0, %v641
    %v643 = vpop.f32.mrf.mxu0
    %v644 = vpop.f32.mrf.mxu0
    %v645 = vadd.f32 0.0, %v644
    %v646 = vpop.f32.mrf.mxu0
    %647 = vmatprep.mubr.bf16.mxu0 0
    %648 = vmatmul.mubr.bf16.gmra.mxu0 %v286
    %v649 = vpop.f32.mrf.mxu0
    %v650 = vadd.f32 0.0, %v649
    %v651 = vpop.f32.mrf.mxu0
    %v652 = vpop.f32.mrf.mxu0
    %v653 = vadd.f32 0.0, %v652
    %v654 = vpop.f32.mrf.mxu0
    %655 = vdwg.mxu0
    %v656 = vld [vmem:[%s2] sm:$0x1]
    %v658 = vlaneseq
    %v659 = vshrl.u32 %v658, 7
    %v660 = vsub.s32 0, %v659
    %v661 = vrot.slane %v656, %v660
    %v663 = vmul.f32 %v402, %v661
    %v664 = vmul.f32 %v405, %v661
    %v665 = vmul.f32 %v410, %v661
    %v666 = vmul.f32 %v413, %v661
    %v667 = vmul.f32 %v418, %v661
    %v668 = vmul.f32 %v421, %v661
    %v669 = vmul.f32 %v426, %v661
    %v670 = vmul.f32 %v429, %v661
    %v671 = vmul.f32 %v434, %v661
    %v672 = vmul.f32 %v437, %v661
    %v673 = vmul.f32 %v442, %v661
    %v674 = vmul.f32 %v445, %v661
    %v675 = vmul.f32 %v450, %v661
    %v676 = vmul.f32 %v453, %v661
    %v677 = vmul.f32 %v458, %v661
    %v678 = vmul.f32 %v461, %v661
    %v679 = vmul.f32 %v466, %v661
    %v680 = vmul.f32 %v469, %v661
    %v681 = vmul.f32 %v474, %v661
    %v682 = vmul.f32 %v477, %v661
    %v683 = vmul.f32 %v482, %v661
    %v684 = vmul.f32 %v485, %v661
    %v685 = vmul.f32 %v490, %v661
    %v686 = vmul.f32 %v493, %v661
    %v687 = vmul.f32 %v498, %v661
    %v688 = vmul.f32 %v501, %v661
    %v689 = vmul.f32 %v506, %v661
    %v690 = vmul.f32 %v509, %v661
    %v691 = vmul.f32 %v514, %v661
    %v692 = vmul.f32 %v517, %v661
    %v693 = vmul.f32 %v522, %v661
    %v694 = vmul.f32 %v525, %v661
    %v695 = vmul.f32 %v530, %v661
    %v696 = vmul.f32 %v533, %v661
    %v697 = vmul.f32 %v538, %v661
    %v698 = vmul.f32 %v541, %v661
    %v699 = vmul.f32 %v546, %v661
    %v700 = vmul.f32 %v549, %v661
    %v701 = vmul.f32 %v554, %v661
    %v702 = vmul.f32 %v557, %v661
    %v703 = vmul.f32 %v562, %v661
    %v704 = vmul.f32 %v565, %v661
    %v705 = vmul.f32 %v570, %v661
    %v706 = vmul.f32 %v573, %v661
    %v707 = vmul.f32 %v578, %v661
    %v708 = vmul.f32 %v581, %v661
    %v709 = vmul.f32 %v586, %v661
    %v710 = vmul.f32 %v589, %v661
    %v711 = vmul.f32 %v594, %v661
    %v712 = vmul.f32 %v597, %v661
    %v713 = vmul.f32 %v602, %v661
    %v714 = vmul.f32 %v605, %v661
    %v715 = vmul.f32 %v610, %v661
    %v716 = vmul.f32 %v613, %v661
    %v717 = vmul.f32 %v618, %v661
    %v718 = vmul.f32 %v621, %v661
    %v719 = vmul.f32 %v626, %v661
    %v720 = vmul.f32 %v629, %v661
    %v721 = vmul.f32 %v634, %v661
    %v722 = vmul.f32 %v637, %v661
    %v723 = vmul.f32 %v642, %v661
    %v724 = vmul.f32 %v645, %v661
    %v725 = vmul.f32 %v650, %v661
    %v726 = vmul.f32 %v653, %v661
    %v727 = vld [vmem:[%s3] sm:$0x1]
    %v729 = vlaneseq
    %v730 = vshrl.u32 %v729, 7
    %v731 = vsub.s32 0, %v730
    %v732 = vrot.slane %v727, %v731
    %v734 = vadd.f32 %v663, %v732
    %v735 = vadd.f32 %v664, %v732
    %v736 = vadd.f32 %v665, %v732
    %v737 = vadd.f32 %v666, %v732
    %v738 = vadd.f32 %v667, %v732
    %v739 = vadd.f32 %v668, %v732
    %v740 = vadd.f32 %v669, %v732
    %v741 = vadd.f32 %v670, %v732
    %v742 = vadd.f32 %v671, %v732
    %v743 = vadd.f32 %v672, %v732
    %v744 = vadd.f32 %v673, %v732
    %v745 = vadd.f32 %v674, %v732
    %v746 = vadd.f32 %v675, %v732
    %v747 = vadd.f32 %v676, %v732
    %v748 = vadd.f32 %v677, %v732
    %v749 = vadd.f32 %v678, %v732
    %v750 = vadd.f32 %v679, %v732
    %v751 = vadd.f32 %v680, %v732
    %v752 = vadd.f32 %v681, %v732
    %v753 = vadd.f32 %v682, %v732
    %v754 = vadd.f32 %v683, %v732
    %v755 = vadd.f32 %v684, %v732
    %v756 = vadd.f32 %v685, %v732
    %v757 = vadd.f32 %v686, %v732
    %v758 = vadd.f32 %v687, %v732
    %v759 = vadd.f32 %v688, %v732
    %v760 = vadd.f32 %v689, %v732
    %v761 = vadd.f32 %v690, %v732
    %v762 = vadd.f32 %v691, %v732
    %v763 = vadd.f32 %v692, %v732
    %v764 = vadd.f32 %v693, %v732
    %v765 = vadd.f32 %v694, %v732
    %v766 = vadd.f32 %v695, %v732
    %v767 = vadd.f32 %v696, %v732
    %v768 = vadd.f32 %v697, %v732
    %v769 = vadd.f32 %v698, %v732
    %v770 = vadd.f32 %v699, %v732
    %v771 = vadd.f32 %v700, %v732
    %v772 = vadd.f32 %v701, %v732
    %v773 = vadd.f32 %v702, %v732
    %v774 = vadd.f32 %v703, %v732
    %v775 = vadd.f32 %v704, %v732
    %v776 = vadd.f32 %v705, %v732
    %v777 = vadd.f32 %v706, %v732
    %v778 = vadd.f32 %v707, %v732
    %v779 = vadd.f32 %v708, %v732
    %v780 = vadd.f32 %v709, %v732
    %v781 = vadd.f32 %v710, %v732
    %v782 = vadd.f32 %v711, %v732
    %v783 = vadd.f32 %v712, %v732
    %v784 = vadd.f32 %v713, %v732
    %v785 = vadd.f32 %v714, %v732
    %v786 = vadd.f32 %v715, %v732
    %v787 = vadd.f32 %v716, %v732
    %v788 = vadd.f32 %v717, %v732
    %v789 = vadd.f32 %v718, %v732
    %v790 = vadd.f32 %v719, %v732
    %v791 = vadd.f32 %v720, %v732
    %v792 = vadd.f32 %v721, %v732
    %v793 = vadd.f32 %v722, %v732
    %v794 = vadd.f32 %v723, %v732
    %v795 = vadd.f32 %v724, %v732
    %v796 = vadd.f32 %v725, %v732
    %v797 = vadd.f32 %v726, %v732
    %v798 = vmax.f32 %v734, 0.0
    %v799 = vmax.f32 %v735, 0.0
    %v800 = vmax.f32 %v736, 0.0
    %v801 = vmax.f32 %v737, 0.0
    %v802 = vmax.f32 %v738, 0.0
    %v803 = vmax.f32 %v739, 0.0
    %v804 = vmax.f32 %v740, 0.0
    %v805 = vmax.f32 %v741, 0.0
    %v806 = vmax.f32 %v742, 0.0
    %v807 = vmax.f32 %v743, 0.0
    %v808 = vmax.f32 %v744, 0.0
    %v809 = vmax.f32 %v745, 0.0
    %v810 = vmax.f32 %v746, 0.0
    %v811 = vmax.f32 %v747, 0.0
    %v812 = vmax.f32 %v748, 0.0
    %v813 = vmax.f32 %v749, 0.0
    %v814 = vmax.f32 %v750, 0.0
    %v815 = vmax.f32 %v751, 0.0
    %v816 = vmax.f32 %v752, 0.0
    %v817 = vmax.f32 %v753, 0.0
    %v818 = vmax.f32 %v754, 0.0
    %v819 = vmax.f32 %v755, 0.0
    %v820 = vmax.f32 %v756, 0.0
    %v821 = vmax.f32 %v757, 0.0
    %v822 = vmax.f32 %v758, 0.0
    %v823 = vmax.f32 %v759, 0.0
    %v824 = vmax.f32 %v760, 0.0
    %v825 = vmax.f32 %v761, 0.0
    %v826 = vmax.f32 %v762, 0.0
    %v827 = vmax.f32 %v763, 0.0
    %v828 = vmax.f32 %v764, 0.0
    %v829 = vmax.f32 %v765, 0.0
    %v830 = vmax.f32 %v766, 0.0
    %v831 = vmax.f32 %v767, 0.0
    %v832 = vmax.f32 %v768, 0.0
    %v833 = vmax.f32 %v769, 0.0
    %v834 = vmax.f32 %v770, 0.0
    %v835 = vmax.f32 %v771, 0.0
    %v836 = vmax.f32 %v772, 0.0
    %v837 = vmax.f32 %v773, 0.0
    %v838 = vmax.f32 %v774, 0.0
    %v839 = vmax.f32 %v775, 0.0
    %v840 = vmax.f32 %v776, 0.0
    %v841 = vmax.f32 %v777, 0.0
    %v842 = vmax.f32 %v778, 0.0
    %v843 = vmax.f32 %v779, 0.0
    %v844 = vmax.f32 %v780, 0.0
    %v845 = vmax.f32 %v781, 0.0
    %v846 = vmax.f32 %v782, 0.0
    %v847 = vmax.f32 %v783, 0.0
    %v848 = vmax.f32 %v784, 0.0
    %v849 = vmax.f32 %v785, 0.0
    %v850 = vmax.f32 %v786, 0.0
    %v851 = vmax.f32 %v787, 0.0
    %v852 = vmax.f32 %v788, 0.0
    %v853 = vmax.f32 %v789, 0.0
    %v854 = vmax.f32 %v790, 0.0
    %v855 = vmax.f32 %v791, 0.0
    %v856 = vmax.f32 %v792, 0.0
    %v857 = vmax.f32 %v793, 0.0
    %v858 = vmax.f32 %v794, 0.0
    %v859 = vmax.f32 %v795, 0.0
    %v860 = vmax.f32 %v796, 0.0
    %v861 = vmax.f32 %v797, 0.0
    %862 = vst [vmem:[#allocation7] sm:$0xff] %v798
    %863 = vst [vmem:[#allocation7 + $0x8] sm:$0xff] %v799
    %864 = vst [vmem:[#allocation7 + $0x10] sm:$0xff] %v800
    %865 = vst [vmem:[#allocation7 + $0x18] sm:$0xff] %v801
    %866 = vst [vmem:[#allocation7 + $0x20] sm:$0xff] %v802
    %867 = vst [vmem:[#allocation7 + $0x28] sm:$0xff] %v803
    %868 = vst [vmem:[#allocation7 + $0x30] sm:$0xff] %v804
    %869 = vst [vmem:[#allocation7 + $0x38] sm:$0xff] %v805
    %870 = vst [vmem:[#allocation7 + $0x40] sm:$0xff] %v806
    %871 = vst [vmem:[#allocation7 + $0x48] sm:$0xff] %v807
    %872 = vst [vmem:[#allocation7 + $0x50] sm:$0xff] %v808
    %873 = vst [vmem:[#allocation7 + $0x58] sm:$0xff] %v809
    %874 = vst [vmem:[#allocation7 + $0x60] sm:$0xff] %v810
    %875 = vst [vmem:[#allocation7 + $0x68] sm:$0xff] %v811
    %876 = vst [vmem:[#allocation7 + $0x70] sm:$0xff] %v812
    %877 = vst [vmem:[#allocation7 + $0x78] sm:$0xff] %v813
    %878 = vst [vmem:[#allocation7 + $0x80] sm:$0xff] %v814
    %879 = vst [vmem:[#allocation7 + $0x88] sm:$0xff] %v815
    %880 = vst [vmem:[#allocation7 + $0x90] sm:$0xff] %v816
    %881 = vst [vmem:[#allocation7 + $0x98] sm:$0xff] %v817
    %882 = vst [vmem:[#allocation7 + $0xa0] sm:$0xff] %v818
    %883 = vst [vmem:[#allocation7 + $0xa8] sm:$0xff] %v819
    %884 = vst [vmem:[#allocation7 + $0xb0] sm:$0xff] %v820
    %885 = vst [vmem:[#allocation7 + $0xb8] sm:$0xff] %v821
    %886 = vst [vmem:[#allocation7 + $0xc0] sm:$0xff] %v822
    %887 = vst [vmem:[#allocation7 + $0xc8] sm:$0xff] %v823
    %888 = vst [vmem:[#allocation7 + $0xd0] sm:$0xff] %v824
    %889 = vst [vmem:[#allocation7 + $0xd8] sm:$0xff] %v825
    %890 = vst [vmem:[#allocation7 + $0xe0] sm:$0xff] %v826
    %891 = vst [vmem:[#allocation7 + $0xe8] sm:$0xff] %v827
    %892 = vst [vmem:[#allocation7 + $0xf0] sm:$0xff] %v828
    %893 = vst [vmem:[#allocation7 + $0xf8] sm:$0xff] %v829
    %894 = vst [vmem:[#allocation7 + $0x100] sm:$0xff] %v830
    %895 = vst [vmem:[#allocation7 + $0x108] sm:$0xff] %v831
    %896 = vst [vmem:[#allocation7 + $0x110] sm:$0xff] %v832
    %897 = vst [vmem:[#allocation7 + $0x118] sm:$0xff] %v833
    %898 = vst [vmem:[#allocation7 + $0x120] sm:$0xff] %v834
    %899 = vst [vmem:[#allocation7 + $0x128] sm:$0xff] %v835
    %900 = vst [vmem:[#allocation7 + $0x130] sm:$0xff] %v836
    %901 = vst [vmem:[#allocation7 + $0x138] sm:$0xff] %v837
    %902 = vst [vmem:[#allocation7 + $0x140] sm:$0xff] %v838
    %903 = vst [vmem:[#allocation7 + $0x148] sm:$0xff] %v839
    %904 = vst [vmem:[#allocation7 + $0x150] sm:$0xff] %v840
    %905 = vst [vmem:[#allocation7 + $0x158] sm:$0xff] %v841
    %906 = vst [vmem:[#allocation7 + $0x160] sm:$0xff] %v842
    %907 = vst [vmem:[#allocation7 + $0x168] sm:$0xff] %v843
    %908 = vst [vmem:[#allocation7 + $0x170] sm:$0xff] %v844
    %909 = vst [vmem:[#allocation7 + $0x178] sm:$0xff] %v845
    %910 = vst [vmem:[#allocation7 + $0x180] sm:$0xff] %v846
    %911 = vst [vmem:[#allocation7 + $0x188] sm:$0xff] %v847
    %912 = vst [vmem:[#allocation7 + $0x190] sm:$0xff] %v848
    %913 = vst [vmem:[#allocation7 + $0x198] sm:$0xff] %v849
    %914 = vst [vmem:[#allocation7 + $0x1a0] sm:$0xff] %v850
    %915 = vst [vmem:[#allocation7 + $0x1a8] sm:$0xff] %v851
    %916 = vst [vmem:[#allocation7 + $0x1b0] sm:$0xff] %v852
    %917 = vst [vmem:[#allocation7 + $0x1b8] sm:$0xff] %v853
    %918 = vst [vmem:[#allocation7 + $0x1c0] sm:$0xff] %v854
    %919 = vst [vmem:[#allocation7 + $0x1c8] sm:$0xff] %v855
    %920 = vst [vmem:[#allocation7 + $0x1d0] sm:$0xff] %v856
    %921 = vst [vmem:[#allocation7 + $0x1d8] sm:$0xff] %v857
    %922 = vst [vmem:[#allocation7 + $0x1e0] sm:$0xff] %v858
    %923 = vst [vmem:[#allocation7 + $0x1e8] sm:$0xff] %v859
    %924 = vst [vmem:[#allocation7 + $0x1f0] sm:$0xff] %v860
    %925 = vst [vmem:[#allocation7 + $0x1f8] sm:$0xff] %v861
    // Predicated region
    $region26: #{tpu_custom_call.1} parent=1 // pred_check
      _
    $region27: #{tpu_custom_call.1} parent=1 // pred_check_branch
      %927 = sbr.rel (0) target = $region29
    $region28: #{tpu_custom_call.1} parent=1 // pred_region
      %s929 = ssub.s32 8192, 8192
      %930 = vsyncadd [#allocation4], %s929
      %s931 = sshll.u32 [#allocation7], 4
      %s932 = int_to_ptr.vmem [resolvable:$true] %s931
      %937 = dma.vmem_to_hbm [thread:$0]  %s932, 8192, %s4, [#allocation4], 128, 128, 8
    $region29: #{tpu_custom_call.1} parent=1 // pred_fallthru
      _
    // Predicated region
    $region30: #{tpu_custom_call.1} parent=1 // pred_check
      _
    $region31: #{tpu_custom_call.1} parent=1 // pred_check_branch
      %939 = sbr.rel (0) target = $region33
    $region32: #{tpu_custom_call.1} parent=1 // pred_region
      %940 = dma.done [#allocation4], 8192
    $region33: #{tpu_custom_call.1} parent=1 // pred_fallthru
      _
    %941 = vsyncpa [#allocation3], 1
    %942 = vsyncpa [#allocation6], 1
    %943 = vsyncpa [#allocation4], 1

</llo_original>
